<compile_context>
chip_gen: v5e
topology: v5e:2x2
jax: 0.10.0
libtpu: 0.0.40
codegen_flags: <defaults>
</compile_context>

<pallas_src>
import jax
import jax.numpy as jnp
import numpy as np
from jax.experimental import pallas as pl
from jax.experimental.pallas import tpu as pltpu

BN_EPS = 1e-5


# ----------------------------------------------------------------------------
# Pallas kernel: fused 1x1 gated conv + folded BN + ReLU for one
# (batch, spatial-tile) block.
# ----------------------------------------------------------------------------
def _gated_outconv_kernel(x_ref, w_ref, b_ref, shift_ref, o_ref):
    # x_ref:     (1, Cin, TL)      activation tile, channels on sublanes, pixels on lanes
    # w_ref:     (2*Cout, Cin)     stacked weights: rows [:Cout] content (BN scale folded),
    #                              rows [Cout:] gate
    # b_ref:     (2*Cout, 1)       stacked biases (content bias pre-scaled by BN scale)
    # shift_ref: (Cout, 1)         folded BN shift (beta - mean*scale)
    # o_ref:     (1, Cout, TL)     lane-dense output tile
    cout = o_ref.shape[1]
    x = x_ref[0]                                                   # (Cin, TL)
    # Single stacked MXU matmul for both conv halves, f32 accumulation.
    y = jnp.dot(w_ref[...], x, preferred_element_type=jnp.float32) + b_ref[...]
    a = y[:cout]                                                   # content (BN scale folded)
    g = y[cout:]                                                   # gate
    z = a * jax.nn.sigmoid(g) + shift_ref[...]                     # gate + folded BN
    z = jnp.maximum(z, 0.0)                                        # ReLU
    o_ref[...] = z[None].astype(o_ref.dtype)


def _pick_lane_tile(hw, cin, cout, itemsize):
    # Largest lane tile that (a) divides H*W, (b) is a multiple of 128, and
    # (c) keeps the double-buffered activation+output tiles comfortably inside
    # VMEM.  Falls back to the full H*W (a block equal to the full array dim is
    # always legal) when nothing divides.
    budget = 8 * 1024 * 1024  # bytes for double-buffered in+out tiles
    for t in (8192, 4096, 2048, 1024, 512, 256, 128):
        if hw % t == 0 and 2 * (cin + cout) * t * itemsize <= budget:
            return t
    return hw


# ----------------------------------------------------------------------------
# GatedOutConv forward (input / output in NCHW, like PyTorch).
# ----------------------------------------------------------------------------
def gated_out_conv_forward(x_nchw, params):
    N, Cin, H, W = x_nchw.shape
    w = params["w"]                         # (2*Cout, Cin, 1, 1) OIHW
    cout2 = w.shape[0]
    cout = cout2 // 2
    hw = H * W

    compute_dtype = x_nchw.dtype            # bf16 activations -> bf16 MXU inputs
    itemsize = jnp.dtype(compute_dtype).itemsize
    tl = _pick_lane_tile(hw, Cin, cout, itemsize)
    grid = (N, hw // tl)

    # Fold BatchNorm (eval mode) into the conv.
    scale = params["gamma"] / jnp.sqrt(params["var"] + BN_EPS)     # (Cout,)
    shift = params["beta"] - params["mean"] * scale                # (Cout,)

    w2d = w.reshape(cout2, Cin).astype(jnp.float32)                # (2*Cout, Cin)
    w_all = jnp.concatenate(
        [w2d[:cout] * scale[:, None],                              # BN scale folded in
         w2d[cout:]], axis=0).astype(compute_dtype)                # (2*Cout, Cin)
    b_all = jnp.concatenate(
        [params["b"][:cout] * scale,
         params["b"][cout:]], axis=0)[:, None].astype(jnp.float32)  # (2*Cout, 1)
    shift = shift[:, None].astype(jnp.float32)                      # (Cout, 1)

    x_flat = x_nchw.reshape(N, Cin, hw)     # free reshape, stays NCHW-contiguous

    out = pl.pallas_call(
        _gated_outconv_kernel,
        out_shape=jax.ShapeDtypeStruct((N, cout, hw), x_nchw.dtype),
        grid=grid,
        in_specs=[
            pl.BlockSpec((1, Cin, tl), lambda n, t: (n, 0, t)),
            pl.BlockSpec((cout2, Cin), lambda n, t: (0, 0)),
            pl.BlockSpec((cout2, 1), lambda n, t: (0, 0)),
            pl.BlockSpec((cout, 1), lambda n, t: (0, 0)),
        ],
        out_specs=pl.BlockSpec((1, cout, tl), lambda n, t: (n, 0, t)),
        compiler_params=pltpu.CompilerParams(
            dimension_semantics=("parallel", "parallel"),
            # Per-step footprint is bounded to a few MiB by the lane-tile
            # selection; 32 MiB is safe on v5e/v6e/v7x.
            vmem_limit_bytes=32 * 1024 * 1024,
        ),
    )(x_flat, w_all, b_all, shift)

    return out.reshape(N, cout, H, W)


# ----------------------------------------------------------------------------
# Pure-JAX reference (PyTorch semantics, for correctness check).
# ----------------------------------------------------------------------------
def _ref_forward(x, params):
    w = params["w"]                                          # (2*Cout, Cin, 1, 1)
    y = jax.lax.conv_general_dilated(
        x, w, window_strides=(1, 1), padding="VALID",
        dimension_numbers=("NCHW", "OIHW", "NCHW"))
    y = y + params["b"][None, :, None, None]
    cout = w.shape[0] // 2
    a, g = y[:, :cout], y[:, cout:]
    z = a * jax.nn.sigmoid(g)
    z = ((z - params["mean"][None, :, None, None])
         / jnp.sqrt(params["var"] + BN_EPS)[None, :, None, None]
         * params["gamma"][None, :, None, None]
         + params["beta"][None, :, None, None])
    return jnp.maximum(z, 0.0)


# ----------------------------------------------------------------------------
# Deterministic parameter init + run.
# ----------------------------------------------------------------------------
def make_params(key, in_channels, out_channels):
    ks = jax.random.split(key, 6)
    cout2 = out_channels * 2
    bound = 1.0 / np.sqrt(in_channels * 1 * 1)               # PyTorch Conv2d default
    return {
        "w": jax.random.uniform(ks[0], (cout2, in_channels, 1, 1), jnp.float32,
                                -bound, bound),
        "b": jax.random.uniform(ks[1], (cout2,), jnp.float32, -bound, bound),
        "gamma": 1.0 + 0.1 * jax.random.normal(ks[2], (out_channels,), jnp.float32),
        "beta": 0.1 * jax.random.normal(ks[3], (out_channels,), jnp.float32),
        "mean": 0.1 * jax.random.normal(ks[4], (out_channels,), jnp.float32),
        "var": 1.0 + 0.1 * jax.random.uniform(ks[5], (out_channels,), jnp.float32),
    }


if __name__ == "__main__":
    key = jax.random.PRNGKey(0)
    kx, kp = jax.random.split(key, 2)

    in_channels, out_channels = 8, 4
    N, H, W = 2, 16, 16
    x = jax.random.normal(kx, (N, in_channels, H, W), jnp.float32)
    params = make_params(kp, in_channels, out_channels)

    out = gated_out_conv_forward(x, params)
    out = jax.block_until_ready(out)

    ref = jax.block_until_ready(_ref_forward(x, params))
    assert out.shape == (N, out_channels, H, W), out.shape
    if not np.allclose(np.asarray(out), np.asarray(ref), atol=1e-4, rtol=1e-4):
        raise AssertionError("Pallas kernel output mismatch vs JAX reference")

    print("KERNEL_OK")
</pallas_src>

<mosaic_0001>
module attributes {stable_mosaic.version = 11 : i64} {
  func.func @_gated_outconv_kernel(%arg0: i32, %arg1: i32, %arg2: memref<1x8x256xf32, #tpu.memory_space<vmem>>, %arg3: memref<8x8xf32, #tpu.memory_space<vmem>>, %arg4: memref<8x1xf32, #tpu.memory_space<vmem>>, %arg5: memref<4x1xf32, #tpu.memory_space<vmem>>, %arg6: memref<1x4x256xf32, #tpu.memory_space<vmem>>) attributes {dimension_semantics = [#tpu.dimension_semantics<parallel>, #tpu.dimension_semantics<parallel>], iteration_bounds = array<i64: 2, 1>, scalar_prefetch = 0 : i64, scratch_operands = 0 : i64, tpu.core_type = #tpu.core_type<tc>, window_params = [{transform_indices = @transform_0, window_bounds = array<i64: 1, 8, 256>}, {pipeline_mode = #tpu.pipeline_mode<synchronous>, transform_indices = @transform_1, window_bounds = array<i64: 8, 8>}, {pipeline_mode = #tpu.pipeline_mode<synchronous>, transform_indices = @transform_2, window_bounds = array<i64: 8, 1>}, {pipeline_mode = #tpu.pipeline_mode<synchronous>, transform_indices = @transform_3, window_bounds = array<i64: 4, 1>}, {transform_indices = @transform_4, window_bounds = array<i64: 1, 4, 256>}]} {
    %c0 = arith.constant 0 : index
    %c0_0 = arith.constant 0 : index
    %c0_1 = arith.constant 0 : index
    %0 = vector.load %arg2[%c0, %c0_0, %c0_1] : memref<1x8x256xf32, #tpu.memory_space<vmem>>, vector<1x8x256xf32>
    %1 = vector.shape_cast %0 : vector<1x8x256xf32> to vector<8x256xf32>
    %c0_2 = arith.constant 0 : index
    %c0_3 = arith.constant 0 : index
    %2 = vector.load %arg3[%c0_2, %c0_3] : memref<8x8xf32, #tpu.memory_space<vmem>>, vector<8x8xf32>
    %cst = arith.constant dense<0.000000e+00> : vector<8x256xf32>
    %3 = tpu.matmul %2, %1, %cst {dimension_numbers = #tpu.dot_dimension_numbers<[1], [0], [0], [1], [0, 0, 1, 1], [], []>} : vector<8x8xf32>, vector<8x256xf32>, vector<8x256xf32> -> vector<8x256xf32>
    %c0_4 = arith.constant 0 : index
    %c0_5 = arith.constant 0 : index
    %4 = vector.load %arg4[%c0_4, %c0_5] : memref<8x1xf32, #tpu.memory_space<vmem>>, vector<8x1xf32>
    %5 = vector.broadcast %4 : vector<8x1xf32> to vector<8x256xf32>
    %6 = arith.addf %3, %5 : vector<8x256xf32>
    %7 = vector.extract_strided_slice %6 {offsets = [0, 0], sizes = [4, 256], strides = [1, 1]} : vector<8x256xf32> to vector<4x256xf32>
    %8 = vector.extract_strided_slice %6 {offsets = [4, 0], sizes = [4, 256], strides = [1, 1]} : vector<8x256xf32> to vector<4x256xf32>
    %9 = arith.negf %8 : vector<4x256xf32>
    %10 = math.exp %9 : vector<4x256xf32>
    %cst_6 = arith.constant 1.000000e+00 : f32
    %11 = vector.broadcast %cst_6 : f32 to vector<4x256xf32>
    %12 = arith.addf %11, %10 : vector<4x256xf32>
    %13 = arith.divf %11, %12 : vector<4x256xf32>
    %14 = arith.mulf %7, %13 : vector<4x256xf32>
    %c0_7 = arith.constant 0 : index
    %c0_8 = arith.constant 0 : index
    %15 = vector.load %arg5[%c0_7, %c0_8] : memref<4x1xf32, #tpu.memory_space<vmem>>, vector<4x1xf32>
    %16 = vector.broadcast %15 : vector<4x1xf32> to vector<4x256xf32>
    %17 = arith.addf %14, %16 : vector<4x256xf32>
    %cst_9 = arith.constant 0.000000e+00 : f32
    %18 = vector.broadcast %cst_9 : f32 to vector<4x256xf32>
    %19 = arith.maximumf %17, %18 : vector<4x256xf32>
    %20 = vector.shape_cast %19 : vector<4x256xf32> to vector<1x4x256xf32>
    %c0_10 = arith.constant 0 : index
    %c0_11 = arith.constant 0 : index
    %c0_12 = arith.constant 0 : index
    %21 = vector.load %arg6[%c0_10, %c0_11, %c0_12] : memref<1x4x256xf32, #tpu.memory_space<vmem>>, vector<1x4x256xf32>
    tpu.vector_store %arg6[%c0_10, %c0_11, %c0_12], %20 {strides = array<i32>} : memref<1x4x256xf32, #tpu.memory_space<vmem>>, vector<1x4x256xf32>,
    return
  }
  func.func @transform_0(%arg0: i32, %arg1: i32) -> (i32, i32, i32) {
    %c0_i32 = arith.constant 0 : i32
    %c0_i32_0 = arith.constant 0 : i32
    return %arg0, %c0_i32, %arg1 : i32, i32, i32
  }
  func.func @transform_1(%arg0: i32, %arg1: i32) -> (i32, i32) {
    %c0_i32 = arith.constant 0 : i32
    %c0_i32_0 = arith.constant 0 : i32
    %c0_i32_1 = arith.constant 0 : i32
    return %c0_i32, %c0_i32_0 : i32, i32
  }
  func.func @transform_2(%arg0: i32, %arg1: i32) -> (i32, i32) {
    %c0_i32 = arith.constant 0 : i32
    %c0_i32_0 = arith.constant 0 : i32
    %c0_i32_1 = arith.constant 0 : i32
    return %c0_i32, %c0_i32_0 : i32, i32
  }
  func.func @transform_3(%arg0: i32, %arg1: i32) -> (i32, i32) {
    %c0_i32 = arith.constant 0 : i32
    %c0_i32_0 = arith.constant 0 : i32
    %c0_i32_1 = arith.constant 0 : i32
    return %c0_i32, %c0_i32_0 : i32, i32
  }
  func.func @transform_4(%arg0: i32, %arg1: i32) -> (i32, i32, i32) {
    %c0_i32 = arith.constant 0 : i32
    %c0_i32_0 = arith.constant 0 : i32
    return %arg0, %c0_i32, %arg1 : i32, i32, i32
  }
}

</mosaic_0001>

<llo_original>
// kernel: tpu_custom_call.1
$region0: #{tpu_custom_call.1}
  #allocation0 [shape = 'u32[]', space=smem, size = 0x4, offset = 0x4, fixed_abs, tag = 'smem constant byte address 0x4 - core index']
  #allocation1 [shape = 'u32[72,128]{1,0:T(1,128)}', space=vmem, size = 0x9000, scoped, tag = 'internal scratch']
  %s0 = inlined_call_operand.hbm [shape: f32[2,8,256], index: 0, kind: input, shape index: {}]
  %s1 = inlined_call_operand.vmem [shape: f32[8,8], index: 1, kind: input, shape index: {}]
  %s2 = inlined_call_operand.vmem [shape: f32[8,1], index: 2, kind: input, shape index: {}]
  %s3 = inlined_call_operand.vmem [shape: f32[4,1], index: 3, kind: input, shape index: {}]
  %s4 = inlined_call_operand.hbm [shape: f32[2,4,256], index: 4, kind: output, shape index: {}]
  %s5 = sld [smem:[#allocation0]]
  $region53: #{tpu_custom_call.1} parent=0
    _
  %s7 = ssub.s32 1, %s5
  %s8 = scalar_select 0, %s7, %s5
  $region1: #{tpu_custom_call.1} parent=0
    #allocation2 [shape = 'u8[16384]{0}', space=vmem, size = 0x4000, scoped, tag = 'input window, operand 0']
    #allocation3 [shape = 's32[2]{0}', space=sflag, size = 0x8, scoped, tag = 'scoped memory for tpu_custom_call.1']
    #allocation4 [shape = 's32[2]{0}', space=sflag, size = 0x8, scoped, tag = 'scoped memory for tpu_custom_call.1']
    #allocation5 [shape = 'u8[8192]{0}', space=vmem, size = 0x2000, scoped, tag = 'output window, operand 0']
    %9 = vsyncpa [#allocation3], 0
    %s10 = scalar_lea.sflag [#allocation3], 1
    %11 = vsyncpa %s10, 0
    %12 = vsyncpa [#allocation4], 0
    %s13 = scalar_lea.sflag [#allocation4], 1
    %14 = vsyncpa %s13, 0
    loop: start=0, step=1, limit=4
    $region2: #{tpu_custom_call.1} parent=1 // loop_pre_header
      _
    $region3: #{tpu_custom_call.1} parent=1 // loop_header
      %s16 = sphi 0, %s20
      %p17 = scmp.ge.s32.totalorder %s16, 4
      %s23 = sphi 0, %s35
      %s24 = sphi 0, %s31
      %s25 = sphi 0, %s23
      %s26 = sphi 0, %s24
      %s27 = sphi 0, %s25
      %s28 = sphi 0, %s26
      %s40 = sphi 0, %s42
      %s43 = sphi 0, %s40
      %s44 = sphi 0, %s43
      %s60 = sphi 0, %s44
      %s64 = sphi 0, %s64
      %s66 = sphi 0, %s64
      %s67 = sphi 0, %s66
      %s81 = sphi 0, %s67
      %s85 = sphi 0, %s85
      %s87 = sphi 0, %s85
      %s88 = sphi 0, %s87
      %s102 = sphi 0, %s88
      %s106 = sphi 0, %s106
      %s108 = sphi 0, %s106
      %s109 = sphi 0, %s108
      %s123 = sphi 0, %s109
      %s131 = sphi 0, %s133
      %s134 = sphi 0, %s131
      %s135 = sphi 0, %s134
      %s151 = sphi 0, %s135
    $region4: #{tpu_custom_call.1} parent=1 // loop_header_branch
      %19 = sbr.rel (%p17) target = $region8
    $region5: #{tpu_custom_call.1} parent=1 // loop_body
      %s21 = ssub.s32 %s16, 1
      %s22 = ssub.s32 %s16, 2
      %s29 = sadd.s32 1, %s24
      %p30 = scmp.ge.s32.totalorder %s29, 1
      %s31 = scalar_select %p30, 0, %s29
      %s32 = sadd.s32 1, %s23
      %s33 = scalar_select %p30, %s32, %s23
      %p34 = scmp.ge.s32.totalorder %s33, 2
      %s35 = scalar_select %p34, 0, %s33
      %s36 = ssub.s32 %s23, %s35
      %s37 = ssub.s32 %s24, %s31
      %s38 = sor.u32 %s36, %s37
      %p39 = scmp.eq.s32.totalorder %s38, 0
      %s41 = sadd.s32 %s40, 1
      %s42 = scalar_select %p39, %s40, %s41
      %p45 = pneg %p39
      %p46 = scmp.eq.s32.totalorder %s16, 1
      %p47 = por %p45, %p46
      %p48 = scmp.ne.s32.totalorder %s40, %s43
      %p49 = scmp.eq.s32.totalorder %s16, 0
      %p50 = por %p48, %p49
      %p51 = scmp.ne.s32.totalorder %s40, %s43
      %p52 = scmp.eq.s32.totalorder %s21, 1
      %p53 = por %p51, %p52
      %p54 = scmp.ne.s32.totalorder %s43, %s44
      %p55 = scmp.eq.s32.totalorder %s21, 0
      %p56 = por %p54, %p55
      %p57 = scmp.ne.s32.totalorder %s43, %s44
      %p58 = scmp.eq.s32.totalorder %s22, 1
      %p59 = por %p57, %p58
      %p61 = scmp.ne.s32.totalorder %s44, %s60
      %p62 = scmp.eq.s32.totalorder %s22, 0
      %p63 = por %p61, %p62
      %s65 = sadd.s32 %s64, 1
      %p68 = scmp.eq.s32.totalorder %s16, 1
      %p69 = scmp.ne.s32.totalorder %s64, %s66
      %p70 = scmp.eq.s32.totalorder %s16, 0
      %p71 = por %p69, %p70
      %p72 = scmp.ne.s32.totalorder %s64, %s66
      %p73 = scmp.eq.s32.totalorder %s21, 1
      %p74 = por %p72, %p73
      %p75 = scmp.ne.s32.totalorder %s66, %s67
      %p76 = scmp.eq.s32.totalorder %s21, 0
      %p77 = por %p75, %p76
      %p78 = scmp.ne.s32.totalorder %s66, %s67
      %p79 = scmp.eq.s32.totalorder %s22, 1
      %p80 = por %p78, %p79
      %p82 = scmp.ne.s32.totalorder %s67, %s81
      %p83 = scmp.eq.s32.totalorder %s22, 0
      %p84 = por %p82, %p83
      %s86 = sadd.s32 %s85, 1
      %p89 = scmp.eq.s32.totalorder %s16, 1
      %p90 = scmp.ne.s32.totalorder %s85, %s87
      %p91 = scmp.eq.s32.totalorder %s16, 0
      %p92 = por %p90, %p91
      %p93 = scmp.ne.s32.totalorder %s85, %s87
      %p94 = scmp.eq.s32.totalorder %s21, 1
      %p95 = por %p93, %p94
      %p96 = scmp.ne.s32.totalorder %s87, %s88
      %p97 = scmp.eq.s32.totalorder %s21, 0
      %p98 = por %p96, %p97
      %p99 = scmp.ne.s32.totalorder %s87, %s88
      %p100 = scmp.eq.s32.totalorder %s22, 1
      %p101 = por %p99, %p100
      %p103 = scmp.ne.s32.totalorder %s88, %s102
      %p104 = scmp.eq.s32.totalorder %s22, 0
      %p105 = por %p103, %p104
      %s107 = sadd.s32 %s106, 1
      %p110 = scmp.eq.s32.totalorder %s16, 1
      %p111 = scmp.ne.s32.totalorder %s106, %s108
      %p112 = scmp.eq.s32.totalorder %s16, 0
      %p113 = por %p111, %p112
      %p114 = scmp.ne.s32.totalorder %s106, %s108
      %p115 = scmp.eq.s32.totalorder %s21, 1
      %p116 = por %p114, %p115
      %p117 = scmp.ne.s32.totalorder %s108, %s109
      %p118 = scmp.eq.s32.totalorder %s21, 0
      %p119 = por %p117, %p118
      %p120 = scmp.ne.s32.totalorder %s108, %s109
      %p121 = scmp.eq.s32.totalorder %s22, 1
      %p122 = por %p120, %p121
      %p124 = scmp.ne.s32.totalorder %s109, %s123
      %p125 = scmp.eq.s32.totalorder %s22, 0
      %p126 = por %p124, %p125
      %s127 = ssub.s32 %s23, %s35
      %s128 = ssub.s32 %s24, %s31
      %s129 = sor.u32 %s127, %s128
      %p130 = scmp.eq.s32.totalorder %s129, 0
      %s132 = sadd.s32 %s131, 1
      %s133 = scalar_select %p130, %s131, %s132
      %p136 = pneg %p130
      %p137 = scmp.eq.s32.totalorder %s16, 1
      %p138 = por %p136, %p137
      %p139 = scmp.ne.s32.totalorder %s131, %s134
      %p140 = scmp.eq.s32.totalorder %s16, 0
      %p141 = por %p139, %p140
      %p142 = scmp.ne.s32.totalorder %s131, %s134
      %p143 = scmp.eq.s32.totalorder %s21, 1
      %p144 = por %p142, %p143
      %p145 = scmp.ne.s32.totalorder %s134, %s135
      %p146 = scmp.eq.s32.totalorder %s21, 0
      %p147 = por %p145, %p146
      %p148 = scmp.ne.s32.totalorder %s134, %s135
      %p149 = scmp.eq.s32.totalorder %s22, 1
      %p150 = por %p148, %p149
      %p152 = scmp.ne.s32.totalorder %s135, %s151
      %p153 = scmp.eq.s32.totalorder %s22, 0
      %p154 = por %p152, %p153
      %p155 = scmp.le.s32.totalorder 1, %s16
      %p156 = scmp.lt.s32.totalorder %s16, 3
      %p157 = pnand %p155, %p156
      %p158 = pneg %p157
      // Predicated region
      $region9: #{tpu_custom_call.1} parent=5 // pred_check
        _
      $region10: #{tpu_custom_call.1} parent=5 // pred_check_branch
        %160 = sbr.rel (%p157) target = $region12
      $region11: #{tpu_custom_call.1} parent=5 // pred_region
        %s161 = ssub.s32 %s16, 1
        // Predicated region
        $region13: #{tpu_custom_call.1} parent=11 // pred_check
          %p162 = pneg %p77
        $region14: #{tpu_custom_call.1} parent=11 // pred_check_branch
          %164 = sbr.rel (%p162) target = $region16
        $region15: #{tpu_custom_call.1} parent=11 // pred_region
          _
        $region16: #{tpu_custom_call.1} parent=11 // pred_fallthru
          _
        // Predicated region
        $region17: #{tpu_custom_call.1} parent=11 // pred_check
          %p165 = pneg %p98
        $region18: #{tpu_custom_call.1} parent=11 // pred_check_branch
          %167 = sbr.rel (%p165) target = $region20
        $region19: #{tpu_custom_call.1} parent=11 // pred_region
          _
        $region20: #{tpu_custom_call.1} parent=11 // pred_fallthru
          _
        // Predicated region
        $region21: #{tpu_custom_call.1} parent=11 // pred_check
          %p168 = pneg %p119
        $region22: #{tpu_custom_call.1} parent=11 // pred_check_branch
          %170 = sbr.rel (%p168) target = $region24
        $region23: #{tpu_custom_call.1} parent=11 // pred_region
          _
        $region24: #{tpu_custom_call.1} parent=11 // pred_fallthru
          _
      $region12: #{tpu_custom_call.1} parent=5 // pred_fallthru
        _
      %p171 = scmp.lt.s32.totalorder %s16, 2
      // Predicated region
      $region25: #{tpu_custom_call.1} parent=5 // pred_check
        %p172 = pneg %p171
      $region26: #{tpu_custom_call.1} parent=5 // pred_check_branch
        %174 = sbr.rel (%p172) target = $region28
      $region27: #{tpu_custom_call.1} parent=5 // pred_region
        // Predicated region
        $region29: #{tpu_custom_call.1} parent=27 // pred_check
          %p175 = pneg %p50
        $region30: #{tpu_custom_call.1} parent=27 // pred_check_branch
          %177 = sbr.rel (%p175) target = $region32
        $region31: #{tpu_custom_call.1} parent=27 // pred_region
          %s178 = sand.u32 %s40, 1
          %s179 = scalar_lea.sflag [#allocation3], %s178
          %s180 = sand.u32 %s40, 1
          %s181 = smul.addr %s180, 16
          %s182 = scalar_lea.vmem [#allocation2], %s181
          %s183 = smul.u32 2, %s24
          %185 = vsyncadd %s179, 0
          %s186 = smul.addr %s23, 2
          %s187 = sadd.s32 %s183, %s186
          %s188 = smul.addr %s187, 8
          %s189 = scalar_lea.hbm %s0, %s188
          %s191 = sshll.u32 %s189, 4
          %s192 = int_to_ptr.hbm [resolvable:$true] %s191
          %s193 = sshll.u32 %s182, 4
          %s194 = int_to_ptr.vmem [resolvable:$true] %s193
          %196 = dma.hbm_to_vmem [thread:$0]  %s192, 256, %s194, %s179
        $region32: #{tpu_custom_call.1} parent=27 // pred_fallthru
          _
      $region28: #{tpu_custom_call.1} parent=5 // pred_fallthru
        _
      %p197 = scmp.le.s32.totalorder 1, %s16
      %p198 = scmp.lt.s32.totalorder %s16, 3
      %p199 = pnand %p197, %p198
      %p200 = pneg %p199
      // Predicated region
      $region33: #{tpu_custom_call.1} parent=5 // pred_check
        _
      $region34: #{tpu_custom_call.1} parent=5 // pred_check_branch
        %202 = sbr.rel (%p199) target = $region36
      $region35: #{tpu_custom_call.1} parent=5 // pred_region
        %s203 = ssub.s32 %s16, 1
        %s204 = sand.u32 %s43, 1
        %s205 = scalar_lea.sflag [#allocation3], %s204
        %s206 = sand.u32 %s43, 1
        %s207 = smul.addr %s206, 16
        %s208 = scalar_lea.vmem [#allocation2], %s207
        // Predicated region
        $region37: #{tpu_custom_call.1} parent=35 // pred_check
          %p209 = pneg %p56
        $region38: #{tpu_custom_call.1} parent=35 // pred_check_branch
          %211 = sbr.rel (%p209) target = $region40
        $region39: #{tpu_custom_call.1} parent=35 // pred_region
          %213 = dma.done %s205, 256
        $region40: #{tpu_custom_call.1} parent=35 // pred_fallthru
          _
        %s214 = sand.u32 %s43, 1
        %s215 = scalar_lea.sflag [#allocation3], %s214
        %s216 = sand.u32 %s43, 1
        %s217 = smul.addr %s216, 16
        %s218 = scalar_lea.vmem [#allocation2], %s217
        %p219 = pneg %p56
        %p220 = pneg %p53
        %p221 = pneg %p77
        %p222 = pneg %p74
        %p223 = pneg %p98
        %p224 = pneg %p95
        %p225 = pneg %p119
        %p226 = pneg %p116
        %p227 = pneg %p147
        %p228 = pneg %p144
        %s229 = sand.u32 %s134, 1
        %s230 = scalar_lea.sflag [#allocation4], %s229
        %s231 = sand.u32 %s134, 1
        %s232 = smul.addr %s231, 8
        %s233 = scalar_lea.vmem [#allocation5], %s232
        %s234 = smul.u32 2, %s26
        %s235 = smul.u32 2, %s26
        %v236 = vld [vmem:[%s208] sm:$0xff]
        %v237 = vld [vmem:[%s208 + $0x8] sm:$0xff]
        %v238 = vld [vmem:[%s1] sm:$0xff]
        %v239 = vld [vmem:[%s2] sm:$0xff]
        %241 = vset.pattern.permute.xlu0 0
        %242 = vperm.xlu0 %241, %v239
        %v243 = vpop.permute.xlu0 %242
        %vm245 = vcmask 64512
        %v247 = vsel %vm245, %v238, 0
        %249 = vmatpush.msra.mxu0 0.0
        %250 = vmatpush.msra.mxu0 0.0
        %251 = vmatpush.msra.mxu0 0.0
        %252 = vmatpush.msra.mxu0 0.0
        %253 = vmatpush.msra.mxu0 0.0
        %254 = vmatpush.msra.mxu0 0.0
        %255 = vmatpush.msra.mxu0 0.0
        %256 = vmatpush.msra.mxu0 0.0
        %257 = vmatpush.msra.mxu0 0.0
        %258 = vmatpush.msra.mxu0 0.0
        %259 = vmatpush.msra.mxu0 0.0
        %260 = vmatpush.msra.mxu0 0.0
        %261 = vmatpush.msra.mxu0 0.0
        %262 = vmatpush.msra.mxu0 0.0
        %263 = vmatpush.msra.mxu0 0.0
        %264 = vmatpush.msra.mxu0 %v236
        %265 = vmatmul.f32.gmra.mxu0 %v247
        %v266 = vpop.f32.mrf.mxu0
        %v267 = vadd.f32 %v243, %v266
        %268 = vdwg.mxu0
        %269 = vmatpush.msra.mxu0 0.0
        %270 = vmatpush.msra.mxu0 0.0
        %271 = vmatpush.msra.mxu0 0.0
        %272 = vmatpush.msra.mxu0 0.0
        %273 = vmatpush.msra.mxu0 0.0
        %274 = vmatpush.msra.mxu0 0.0
        %275 = vmatpush.msra.mxu0 0.0
        %276 = vmatpush.msra.mxu0 0.0
        %277 = vmatpush.msra.mxu0 0.0
        %278 = vmatpush.msra.mxu0 0.0
        %279 = vmatpush.msra.mxu0 0.0
        %280 = vmatpush.msra.mxu0 0.0
        %281 = vmatpush.msra.mxu0 0.0
        %282 = vmatpush.msra.mxu0 0.0
        %283 = vmatpush.msra.mxu0 0.0
        %284 = vmatpush.msra.mxu0 %v237
        %285 = vmatmul.f32.gmra.mxu0 %v247
        %v286 = vpop.f32.mrf.mxu0
        %v287 = vadd.f32 %v243, %v286
        %288 = vdwg.mxu0
        %v289 = vxor.u32 %v267, 2147483648
        %v290 = vxor.u32 %v287, 2147483648
        %v291 = vmul.f32 %v289, 1.442695
        %v292 = vpow.pop %v291
        %v293 = vmul.f32 %v290, 1.442695
        %v294 = vpow.pop %v293
        %v295 = vadd.f32 %v292, 1.0
        %v296 = vadd.f32 %v294, 1.0
        %v297 = vrcp.pop %v295
        %v298 = vmul.f32 %v295, %v297
        %v299 = vsub.f32 1.0, %v298
        %v300 = vmul.f32 %v297, %v299
        %v301 = vadd.f32 %v297, %v300
        %vm302 = vweird.f32 %v295
        %vm303 = vweird.f32 %v297
        %vm304 = vmor %vm302, %vm303
        %v305 = vsel %vm304, %v297, %v301
        %v306 = vand.u32 2147483647, %v295
        %vm307 = vcmp.eq.f32.partialorder %v306, 8.507059e+37
        %v308 = vand.u32 %v295, 2147483648
        %v309 = vor.u32 1.1754944e-38, %v308
        %v310 = vsel %vm307, %v309, %v305
        %v311 = vmul.f32 1.0, %v310
        %v312 = vrcp.pop %v296
        %v313 = vmul.f32 %v296, %v312
        %v314 = vsub.f32 1.0, %v313
        %v315 = vmul.f32 %v312, %v314
        %v316 = vadd.f32 %v312, %v315
        %vm317 = vweird.f32 %v296
        %vm318 = vweird.f32 %v312
        %vm319 = vmor %vm317, %vm318
        %v320 = vsel %vm319, %v312, %v316
        %v321 = vand.u32 2147483647, %v296
        %vm322 = vcmp.eq.f32.partialorder %v321, 8.507059e+37
        %v323 = vand.u32 %v296, 2147483648
        %v324 = vor.u32 1.1754944e-38, %v323
        %v325 = vsel %vm322, %v324, %v320
        %v326 = vmul.f32 1.0, %v325
        %v329 = vrot.slane %v311, 4
        %v330 = vrot.slane %v326, 4
        %v333 = vmul.f32 %v267, %v329
        %v334 = vmul.f32 %v287, %v330
        %v335 = vld [vmem:[%s3] sm:$0xf]
        %337 = vset.pattern.permute.xlu0 0
        %338 = vperm.xlu0 %337, %v335
        %v339 = vpop.permute.xlu0 %338
        %v341 = vadd.f32 %v333, %v339
        %v342 = vadd.f32 %v334, %v339
        %v343 = vmax.f32 %v341, 0.0
        %v344 = vmax.f32 %v342, 0.0
        %v347 = vrot.slane %v344, 4
        %vm348 = vcmask 1043456
        %v349 = vsel %vm348, %v343, %v347
        %351 = vst [vmem:[%s233] sm:$0xff] %v349
        %s352 = sand.u32 %s134, 1
        %s353 = scalar_lea.sflag [#allocation4], %s352
        %s354 = sand.u32 %s134, 1
        %s355 = smul.addr %s354, 8
        %s356 = scalar_lea.vmem [#allocation5], %s355
        // Predicated region
        $region41: #{tpu_custom_call.1} parent=35 // pred_check
          %p357 = pneg %p144
        $region42: #{tpu_custom_call.1} parent=35 // pred_check_branch
          %359 = sbr.rel (%p357) target = $region44
        $region43: #{tpu_custom_call.1} parent=35 // pred_region
          %s360 = smul.u32 2, %s26
          %362 = vsyncadd %s353, 0
          %s363 = smul.addr %s25, 2
          %s364 = sadd.s32 %s360, %s363
          %s365 = smul.addr %s364, 4
          %s366 = scalar_lea.hbm %s4, %s365
          %s368 = sshll.u32 %s356, 4
          %s369 = int_to_ptr.vmem [resolvable:$true] %s368
          %s370 = sshll.u32 %s366, 4
          %s371 = int_to_ptr.hbm [resolvable:$true] %s370
          %373 = dma.vmem_to_hbm [thread:$0]  %s369, 128, %s371, %s353
        $region44: #{tpu_custom_call.1} parent=35 // pred_fallthru
          _
      $region36: #{tpu_custom_call.1} parent=5 // pred_fallthru
        _
      %p374 = scmp.le.s32.totalorder 2, %s16
      // Predicated region
      $region45: #{tpu_custom_call.1} parent=5 // pred_check
        %p375 = pneg %p374
      $region46: #{tpu_custom_call.1} parent=5 // pred_check_branch
        %377 = sbr.rel (%p375) target = $region48
      $region47: #{tpu_custom_call.1} parent=5 // pred_region
        %s378 = ssub.s32 %s16, 2
        // Predicated region
        $region49: #{tpu_custom_call.1} parent=47 // pred_check
          %p379 = pneg %p150
        $region50: #{tpu_custom_call.1} parent=47 // pred_check_branch
          %381 = sbr.rel (%p379) target = $region52
        $region51: #{tpu_custom_call.1} parent=47 // pred_region
          %s382 = sand.u32 %s135, 1
          %s383 = scalar_lea.sflag [#allocation4], %s382
          %s384 = sand.u32 %s135, 1
          %s385 = smul.addr %s384, 8
          %s386 = scalar_lea.vmem [#allocation5], %s385
          %388 = dma.done %s383, 128
        $region52: #{tpu_custom_call.1} parent=47 // pred_fallthru
          _
      $region48: #{tpu_custom_call.1} parent=5 // pred_fallthru
        _
    $region6: #{tpu_custom_call.1} parent=1 // loop_footer
      %s20 = sadd.s32 1, %s16
    $region7: #{tpu_custom_call.1} parent=1 // loop_footer_branch
      %15 = sbr.rel target = $region3
    $region8: #{tpu_custom_call.1} parent=1 // loop_exit
      _
    %389 = vsyncpa [#allocation3], 1
    %s390 = scalar_lea.sflag [#allocation3], 1
    %391 = vsyncpa %s390, 1
    %392 = vsyncpa [#allocation4], 1
    %s393 = scalar_lea.sflag [#allocation4], 1
    %394 = vsyncpa %s393, 1

</llo_original>
